<compile_context>
chip_gen: v7x
topology: tpu7x:2x2x1
jax: 0.10.0
libtpu: 0.0.40
codegen_flags: <defaults>
</compile_context>

<pallas_src>
import functools

import jax
import jax.numpy as jnp
from jax import lax
from jax.experimental import pallas as pl
from jax.experimental.pallas import tpu as pltpu


# ---------------------------------------------------------------------------
# Tiling plan
# ---------------------------------------------------------------------------

_MAX_CHUNK_C = 2048            # columns of f32 logits live at once
_MAX_CHUNKS_PER_TILE = 16      # bounds the static unroll / code size
_TARGET_TILE_BYTES = 16 * 1024 * 1024   # multi-MiB streamed bank block


def _round_up(x, m):
    return ((x + m - 1) // m) * m


def _vmem_capacity_bytes():
    """Physical VMEM of the current generation (conservative fallback)."""
    try:
        info = pltpu.get_tpu_info()
        cap = getattr(info, "vmem_capacity_bytes", None)
        if cap:
            return int(cap)
    except Exception:
        pass
    return 64 * 1024 * 1024    # v7x per-TC size; safe everywhere


def _plan_tiling(num_classes, d, batch=256, bank_itemsize=2):
    """Pick (tile_c, chunk_c) from a VMEM byte budget, always pad+mask."""
    chunk_c = min(_MAX_CHUNK_C, _round_up(max(num_classes, 1), 128))

    vmem_cap = _vmem_capacity_bytes()
    budget = int(vmem_cap * 0.70)            # headroom for compiler temps
    fixed = 2 * batch * d * 4                # double-buffered resident f32 x
    fixed += batch * d * 2                   # bf16 xn scratch
    fixed += 6 * max(batch, 8) * 128 * 4     # (B,1) scratch + targets (padded)
    fixed += 2 * 1024 * 1024                 # slack
    per_buf = max((budget - fixed) // 2, chunk_c * d * bank_itemsize)
    per_buf = min(per_buf, _TARGET_TILE_BYTES)

    tile_c = max(chunk_c, (per_buf // (d * bank_itemsize)) // chunk_c * chunk_c)
    tile_c = min(tile_c,
                 _MAX_CHUNKS_PER_TILE * chunk_c,
                 _round_up(num_classes, chunk_c))
    return tile_c, chunk_c


# ---------------------------------------------------------------------------
# Kernel
# ---------------------------------------------------------------------------

def _memory_bank_loss_kernel(
    x_ref,        # (B, D)      f32, resident across the class grid
    f_ref,        # (tile_c, D) bf16, streamed class tile of the memory bank
    tgt_ref,      # (B, 1)      int32, resident
    loss_ref,     # (1, 1)      f32 output
    xn_ref,       # (B, D)      bf16 scratch: normalized * (1/temp) input
    m_ref,        # (B, 1)      f32 scratch: running max
    s_ref,        # (B, 1)      f32 scratch: running exp-sum
    t_ref,        # (B, 1)      f32 scratch: target logit
    *,
    inv_temp,
    tile_c,
    chunk_c,
    num_classes,
    has_padding,
):
    c = pl.program_id(0)
    n_c = pl.num_programs(0)

    @pl.when(c == 0)
    def _init():
        x = x_ref[...].astype(jnp.float32)
        sq = jnp.sum(x * x, axis=1, keepdims=True)                      # (B, 1)
        # F.normalize eps: 1/max(||x||, 1e-12) == rsqrt(max(||x||^2, 1e-24)).
        # Fold the 1/temp logits scale into the same per-row scale.
        scale = lax.rsqrt(jnp.maximum(sq, jnp.float32(1e-24)))
        scale = scale * jnp.float32(inv_temp)
        xn_ref[...] = (x * scale).astype(xn_ref.dtype)                  # bf16
        m_ref[...] = jnp.full_like(m_ref, -jnp.inf)
        s_ref[...] = jnp.zeros_like(s_ref)
        t_ref[...] = jnp.zeros_like(t_ref)

    n_chunks = tile_c // chunk_c   # static

    def process_tile(masked):
        xn = xn_ref[...]
        tgt = tgt_ref[...]
        # Static unroll over class sub-chunks: the streamed DMA block stays
        # big (tile_c rows) but the f32 logits/exp temporaries stay (B, chunk).
        for i in range(n_chunks):
            off = i * chunk_c      # static offset -> free slice
            # (B, chunk) logits: contract D of both operands (no transpose).
            logits = lax.dot_general(
                xn, f_ref[pl.ds(off, chunk_c), :],
                dimension_numbers=(((1,), (1,)), ((), ())),
                preferred_element_type=jnp.float32,
            )
            col = lax.broadcasted_iota(jnp.int32, logits.shape, 1) + (c * tile_c + off)
            if masked:   # only emitted for the last-tile branch
                logits = jnp.where(col < num_classes, logits, -jnp.inf)

            # --- online logsumexp update ---
            m_prev = m_ref[...]
            m_new = jnp.maximum(m_prev, jnp.max(logits, axis=1, keepdims=True))
            alpha = jnp.exp(m_prev - m_new)
            s_ref[...] = alpha * s_ref[...] + jnp.sum(
                jnp.exp(logits - m_new), axis=1, keepdims=True)
            m_ref[...] = m_new

            # --- target logit via masked select (no one-hot) ---
            t_ref[...] += jnp.sum(
                jnp.where(col == tgt, logits, 0.0), axis=1, keepdims=True)

    if has_padding:
        # Only the last class tile contains padded columns; earlier tiles skip
        # the compare/select filler entirely.
        @pl.when(c == n_c - 1)
        def _last_tile():
            process_tile(True)

        @pl.when(c != n_c - 1)
        def _inner_tiles():
            process_tile(False)
    else:
        process_tile(False)

    @pl.when(c == n_c - 1)
    def _finalize():
        lse = m_ref[...] + jnp.log(s_ref[...])                           # (B, 1)
        per_example = lse - t_ref[...]                                   # (B, 1)
        b = per_example.shape[0]
        loss = jnp.sum(per_example) * jnp.float32(1.0 / b)
        loss_ref[...] = jnp.broadcast_to(loss, (1, 1)).astype(jnp.float32)


# ---------------------------------------------------------------------------
# Wrapper
# ---------------------------------------------------------------------------

def memory_bank_loss(inputs, targets, features, temp=0.05, num_classes=None,
                     tile_c=None, chunk_c=None):
    """inputs: (B, D), targets: (B,) int, features: (rows>=C, D) -> f32 loss.

    `features` should already be bf16 and padded to a multiple of tile_c
    (MemoryBankNetPallas stores it that way); otherwise a per-call cast/pad
    copy of the bank is incurred.
    """
    B, D = inputs.shape
    rows, D2 = features.shape
    assert D == D2
    C = int(num_classes) if num_classes is not None else rows
    assert 1 <= C <= rows

    if tile_c is None or chunk_c is None:
        auto_tile, auto_chunk = _plan_tiling(C, D, batch=B)
        tile_c = tile_c or auto_tile
        chunk_c = chunk_c or auto_chunk
    assert tile_c % chunk_c == 0

    tgt2d = targets.astype(jnp.int32).reshape(B, 1)

    feats = features
    if feats.dtype != jnp.bfloat16:
        # Hoist this to bank-update time in steady state (per-call full-bank cast).
        feats = feats.astype(jnp.bfloat16)

    c_pad = _round_up(rows, tile_c)
    if c_pad != rows:
        # Hoist this to bank-construction time in steady state (per-call copy).
        feats = jnp.pad(feats, ((0, c_pad - rows), (0, 0)))
    assert c_pad - C < tile_c, "class padding must be confined to the last tile"
    n_tiles = c_pad // tile_c
    has_padding = (c_pad != C)

    vmem_cap = _vmem_capacity_bytes()
    vmem_limit = min(int(0.75 * vmem_cap), 100 * 1024 * 1024)

    kernel = functools.partial(
        _memory_bank_loss_kernel,
        inv_temp=1.0 / float(temp),
        tile_c=tile_c,
        chunk_c=chunk_c,
        num_classes=C,
        has_padding=has_padding,
    )

    loss = pl.pallas_call(
        kernel,
        out_shape=jax.ShapeDtypeStruct((1, 1), jnp.float32),
        grid_spec=pltpu.PrefetchScalarGridSpec(
            num_scalar_prefetch=0,
            grid=(n_tiles,),
            in_specs=[
                pl.BlockSpec((B, D), lambda c: (0, 0)),        # x: resident
                pl.BlockSpec((tile_c, D), lambda c: (c, 0)),   # bank: streamed
                pl.BlockSpec((B, 1), lambda c: (0, 0)),        # targets: resident
            ],
            out_specs=pl.BlockSpec((1, 1), lambda c: (0, 0)),
            scratch_shapes=[
                pltpu.VMEM((B, D), jnp.bfloat16),   # xn (normalized, 1/temp folded)
                pltpu.VMEM((B, 1), jnp.float32),    # running max
                pltpu.VMEM((B, 1), jnp.float32),    # running exp-sum
                pltpu.VMEM((B, 1), jnp.float32),    # target logit
            ],
        ),
        compiler_params=pltpu.CompilerParams(
            dimension_semantics=("arbitrary",),     # class axis is a reduction
            vmem_limit_bytes=vmem_limit,
        ),
    )(inputs.astype(jnp.float32), feats, tgt2d)
    return loss[0, 0]


class MemoryBankNetPallas:
    """JAX/Pallas port of MemoryBankNet (forward / loss only)."""

    def __init__(self, num_features, num_classes, temp=0.05, momentum=0.01, key=None):
        self.num_features = num_features
        self.num_classes = num_classes
        self.temp = temp
        self.momentum = momentum
        if key is None:
            key = jax.random.PRNGKey(0)
        # Tiling plan is fixed at construction so the bank can be pre-padded
        # and pre-cast once (no per-call bank copies).
        self.tile_c, self.chunk_c = _plan_tiling(num_classes, num_features)
        feats = jax.random.normal(
            key, (num_classes, num_features), dtype=jnp.float32
        ).astype(jnp.bfloat16)                       # bank stored in stream dtype
        c_pad = _round_up(num_classes, self.tile_c)
        if c_pad != num_classes:
            feats = jnp.pad(feats, ((0, c_pad - num_classes), (0, 0)))
        self.features = feats

    def __call__(self, inputs, targets, epoch=None):
        return memory_bank_loss(
            inputs, targets, self.features, temp=self.temp,
            num_classes=self.num_classes,
            tile_c=self.tile_c, chunk_c=self.chunk_c)


if __name__ == "__main__":
    key = jax.random.PRNGKey(0)
    k_feat, k_x, k_t = jax.random.split(key, 3)

    B = 8      # batch
    D = 128    # num_features (lane-aligned)
    C = 384    # num_classes

    net = MemoryBankNetPallas(num_features=D, num_classes=C, temp=0.05,
                              momentum=0.01, key=k_feat)

    inputs = jax.random.normal(k_x, (B, D), dtype=jnp.float32)
    targets = jax.random.randint(k_t, (B,), 0, C, dtype=jnp.int32)

    loss = jax.block_until_ready(net(inputs, targets))

    # Reference in plain JAX, with the same bf16 rounding of the matmul operands.
    xn = inputs / jnp.maximum(jnp.linalg.norm(inputs, axis=1, keepdims=True), 1e-12)
    xn_bf = (xn * (1.0 / net.temp)).astype(jnp.bfloat16).astype(jnp.float32)
    bank = net.features[:C].astype(jnp.float32)
    logits = jnp.dot(xn_bf, bank.T, precision=jax.lax.Precision.HIGHEST)
    lse = jax.scipy.special.logsumexp(logits, axis=1)
    ref = jnp.mean(lse - logits[jnp.arange(B), targets])
    assert jnp.allclose(loss, ref, rtol=5e-3, atol=5e-3), (loss, ref)

    # Also exercise multi-tile streaming, the last-tile padding mask and the
    # multi-chunk inner loop with a forced small tiling plan (same semantics).
    loss_tiled = jax.block_until_ready(
        memory_bank_loss(inputs, targets, net.features, temp=net.temp,
                         num_classes=C, tile_c=256, chunk_c=128))
    assert jnp.allclose(loss_tiled, ref, rtol=5e-3, atol=5e-3), (loss_tiled, ref)

    print("KERNEL_OK")
</pallas_src>

<mosaic_0001>
module attributes {stable_mosaic.version = 11 : i64} {
  func.func @_memory_bank_loss_kernel(%arg0: i32, %arg1: memref<8x128xf32, #tpu.memory_space<vmem>>, %arg2: memref<384x128xbf16, #tpu.memory_space<vmem>>, %arg3: memref<8x1xi32, #tpu.memory_space<vmem>>, %arg4: memref<1x1xf32, #tpu.memory_space<vmem>>, %arg5: memref<8x128xbf16, #tpu.memory_space<vmem>>, %arg6: memref<8x1xf32, #tpu.memory_space<vmem>>, %arg7: memref<8x1xf32, #tpu.memory_space<vmem>>, %arg8: memref<8x1xf32, #tpu.memory_space<vmem>>) attributes {dimension_semantics = [#tpu.dimension_semantics<arbitrary>], iteration_bounds = array<i64: 1>, scalar_prefetch = 0 : i64, scratch_operands = 4 : i64, tpu.core_type = #tpu.core_type<tc>, window_params = [{pipeline_mode = #tpu.pipeline_mode<synchronous>, transform_indices = @transform_0, window_bounds = array<i64: 8, 128>}, {transform_indices = @transform_1, window_bounds = array<i64: 384, 128>}, {pipeline_mode = #tpu.pipeline_mode<synchronous>, transform_indices = @transform_2, window_bounds = array<i64: 8, 1>}, {pipeline_mode = #tpu.pipeline_mode<synchronous>, transform_indices = @transform_3, window_bounds = array<i64: 1, 1>}]} {
    %c0_i32 = arith.constant 0 : i32
    %0 = arith.cmpi eq, %arg0, %c0_i32 : i32
    %1 = arith.extui %0 : i1 to i32
    %c0_i32_0 = arith.constant 0 : i32
    %2 = arith.cmpi ne, %1, %c0_i32_0 : i32
    scf.if %2 {
      %c0_25 = arith.constant 0 : index
      %c0_26 = arith.constant 0 : index
      %40 = vector.load %arg1[%c0_25, %c0_26] : memref<8x128xf32, #tpu.memory_space<vmem>>, vector<8x128xf32>
      %41 = arith.mulf %40, %40 : vector<8x128xf32>
      %cst_27 = arith.constant dense<0.000000e+00> : vector<8xf32>
      %42 = vector.multi_reduction <add>, %41, %cst_27 [1] : vector<8x128xf32> to vector<8xf32>
      %43 = vector.shape_cast %42 : vector<8xf32> to vector<8x1xf32>
      %cst_28 = arith.constant 1.000000e-24 : f32
      %44 = vector.broadcast %cst_28 : f32 to vector<8x1xf32>
      %45 = arith.maximumf %43, %44 : vector<8x1xf32>
      %46 = math.rsqrt %45 : vector<8x1xf32>
      %cst_29 = arith.constant 2.000000e+01 : f32
      %47 = vector.broadcast %cst_29 : f32 to vector<8x1xf32>
      %48 = arith.mulf %46, %47 : vector<8x1xf32>
      %49 = vector.broadcast %48 : vector<8x1xf32> to vector<8x128xf32>
      %50 = arith.mulf %40, %49 : vector<8x128xf32>
      %51 = arith.truncf %50 : vector<8x128xf32> to vector<8x128xbf16>
      %c0_30 = arith.constant 0 : index
      %c0_31 = arith.constant 0 : index
      %52 = vector.load %arg5[%c0_30, %c0_31] : memref<8x128xbf16, #tpu.memory_space<vmem>>, vector<8x128xbf16>
      tpu.vector_store %arg5[%c0_30, %c0_31], %51 {strides = array<i32>} : memref<8x128xbf16, #tpu.memory_space<vmem>>, vector<8x128xbf16>,
      %cst_32 = arith.constant 0xFF800000 : f32
      %53 = vector.broadcast %cst_32 : f32 to vector<8x1xf32>
      %c0_33 = arith.constant 0 : index
      %c0_34 = arith.constant 0 : index
      %54 = vector.load %arg6[%c0_33, %c0_34] : memref<8x1xf32, #tpu.memory_space<vmem>>, vector<8x1xf32>
      tpu.vector_store %arg6[%c0_33, %c0_34], %53 {strides = array<i32>} : memref<8x1xf32, #tpu.memory_space<vmem>>, vector<8x1xf32>,
      %cst_35 = arith.constant 0.000000e+00 : f32
      %55 = vector.broadcast %cst_35 : f32 to vector<8x1xf32>
      %c0_36 = arith.constant 0 : index
      %c0_37 = arith.constant 0 : index
      %56 = vector.load %arg7[%c0_36, %c0_37] : memref<8x1xf32, #tpu.memory_space<vmem>>, vector<8x1xf32>
      tpu.vector_store %arg7[%c0_36, %c0_37], %55 {strides = array<i32>} : memref<8x1xf32, #tpu.memory_space<vmem>>, vector<8x1xf32>,
      %cst_38 = arith.constant 0.000000e+00 : f32
      %57 = vector.broadcast %cst_38 : f32 to vector<8x1xf32>
      %c0_39 = arith.constant 0 : index
      %c0_40 = arith.constant 0 : index
      %58 = vector.load %arg8[%c0_39, %c0_40] : memref<8x1xf32, #tpu.memory_space<vmem>>, vector<8x1xf32>
      tpu.vector_store %arg8[%c0_39, %c0_40], %57 {strides = array<i32>} : memref<8x1xf32, #tpu.memory_space<vmem>>, vector<8x1xf32>,
    } else {
    }
    %c0 = arith.constant 0 : index
    %c0_1 = arith.constant 0 : index
    %3 = vector.load %arg5[%c0, %c0_1] : memref<8x128xbf16, #tpu.memory_space<vmem>>, vector<8x128xbf16>
    %c0_2 = arith.constant 0 : index
    %c0_3 = arith.constant 0 : index
    %4 = vector.load %arg3[%c0_2, %c0_3] : memref<8x1xi32, #tpu.memory_space<vmem>>, vector<8x1xi32>
    %c0_4 = arith.constant 0 : index
    %c0_5 = arith.constant 0 : index
    %5 = vector.load %arg2[%c0_4, %c0_5] : memref<384x128xbf16, #tpu.memory_space<vmem>>, vector<384x128xbf16>
    %cst = arith.constant dense<0.000000e+00> : vector<8x384xf32>
    %6 = tpu.matmul %3, %5, %cst {dimension_numbers = #tpu.dot_dimension_numbers<[1], [1], [0], [0], [0, 0, 1, 0], [], []>} : vector<8x128xbf16>, vector<384x128xbf16>, vector<8x384xf32> -> vector<8x384xf32>
    %7 = tpu.iota {dimensions = array<i32: 1>} : vector<8x384xi32>
    %c384_i32 = arith.constant 384 : i32
    %8 = arith.muli %arg0, %c384_i32 : i32
    %c0_i32_6 = arith.constant 0 : i32
    %9 = arith.addi %8, %c0_i32_6 : i32
    %10 = vector.broadcast %9 : i32 to vector<8x384xi32>
    %11 = arith.addi %7, %10 : vector<8x384xi32>
    %c0_7 = arith.constant 0 : index
    %c0_8 = arith.constant 0 : index
    %12 = vector.load %arg6[%c0_7, %c0_8] : memref<8x1xf32, #tpu.memory_space<vmem>>, vector<8x1xf32>
    %cst_9 = arith.constant dense<0xFF800000> : vector<8xf32>
    %13 = vector.multi_reduction <maximumf>, %6, %cst_9 [1] : vector<8x384xf32> to vector<8xf32>
    %14 = vector.shape_cast %13 : vector<8xf32> to vector<8x1xf32>
    %15 = arith.maximumf %12, %14 : vector<8x1xf32>
    %16 = arith.subf %12, %15 : vector<8x1xf32>
    %17 = math.exp %16 : vector<8x1xf32>
    %c0_10 = arith.constant 0 : index
    %c0_11 = arith.constant 0 : index
    %18 = vector.load %arg7[%c0_10, %c0_11] : memref<8x1xf32, #tpu.memory_space<vmem>>, vector<8x1xf32>
    %19 = arith.mulf %17, %18 : vector<8x1xf32>
    %20 = vector.broadcast %15 : vector<8x1xf32> to vector<8x384xf32>
    %21 = arith.subf %6, %20 : vector<8x384xf32>
    %22 = math.exp %21 : vector<8x384xf32>
    %cst_12 = arith.constant dense<0.000000e+00> : vector<8xf32>
    %23 = vector.multi_reduction <add>, %22, %cst_12 [1] : vector<8x384xf32> to vector<8xf32>
    %24 = vector.shape_cast %23 : vector<8xf32> to vector<8x1xf32>
    %25 = arith.addf %19, %24 : vector<8x1xf32>
    %c0_13 = arith.constant 0 : index
    %c0_14 = arith.constant 0 : index
    %26 = vector.load %arg7[%c0_13, %c0_14] : memref<8x1xf32, #tpu.memory_space<vmem>>, vector<8x1xf32>
    tpu.vector_store %arg7[%c0_13, %c0_14], %25 {strides = array<i32>} : memref<8x1xf32, #tpu.memory_space<vmem>>, vector<8x1xf32>,
    %c0_15 = arith.constant 0 : index
    %c0_16 = arith.constant 0 : index
    %27 = vector.load %arg6[%c0_15, %c0_16] : memref<8x1xf32, #tpu.memory_space<vmem>>, vector<8x1xf32>
    tpu.vector_store %arg6[%c0_15, %c0_16], %15 {strides = array<i32>} : memref<8x1xf32, #tpu.memory_space<vmem>>, vector<8x1xf32>,
    %c0_17 = arith.constant 0 : index
    %c0_18 = arith.constant 0 : index
    %28 = vector.load %arg8[%c0_17, %c0_18] : memref<8x1xf32, #tpu.memory_space<vmem>>, vector<8x1xf32>
    %29 = vector.broadcast %4 : vector<8x1xi32> to vector<8x384xi32>
    %30 = arith.cmpi eq, %11, %29 : vector<8x384xi32>
    %cst_19 = arith.constant 0.000000e+00 : f32
    %31 = vector.broadcast %cst_19 : f32 to vector<8x384xf32>
    %32 = arith.select %30, %6, %31 : vector<8x384xi1>, vector<8x384xf32>
    %cst_20 = arith.constant dense<0.000000e+00> : vector<8xf32>
    %33 = vector.multi_reduction <add>, %32, %cst_20 [1] : vector<8x384xf32> to vector<8xf32>
    %34 = vector.shape_cast %33 : vector<8xf32> to vector<8x1xf32>
    %35 = arith.addf %28, %34 : vector<8x1xf32>
    %c0_21 = arith.constant 0 : index
    %c0_22 = arith.constant 0 : index
    %36 = vector.load %arg8[%c0_21, %c0_22] : memref<8x1xf32, #tpu.memory_space<vmem>>, vector<8x1xf32>
    tpu.vector_store %arg8[%c0_21, %c0_22], %35 {strides = array<i32>} : memref<8x1xf32, #tpu.memory_space<vmem>>, vector<8x1xf32>,
    %c0_i32_23 = arith.constant 0 : i32
    %37 = arith.cmpi eq, %arg0, %c0_i32_23 : i32
    %38 = arith.extui %37 : i1 to i32
    %c0_i32_24 = arith.constant 0 : i32
    %39 = arith.cmpi ne, %38, %c0_i32_24 : i32
    scf.if %39 {
      %c0_25 = arith.constant 0 : index
      %c0_26 = arith.constant 0 : index
      %40 = vector.load %arg6[%c0_25, %c0_26] : memref<8x1xf32, #tpu.memory_space<vmem>>, vector<8x1xf32>
      %c0_27 = arith.constant 0 : index
      %c0_28 = arith.constant 0 : index
      %41 = vector.load %arg7[%c0_27, %c0_28] : memref<8x1xf32, #tpu.memory_space<vmem>>, vector<8x1xf32>
      %42 = math.log %41 : vector<8x1xf32>
      %43 = arith.addf %40, %42 : vector<8x1xf32>
      %c0_29 = arith.constant 0 : index
      %c0_30 = arith.constant 0 : index
      %44 = vector.load %arg8[%c0_29, %c0_30] : memref<8x1xf32, #tpu.memory_space<vmem>>, vector<8x1xf32>
      %45 = arith.subf %43, %44 : vector<8x1xf32>
      %46 = vector.shape_cast %45 : vector<8x1xf32> to vector<1x8x1xf32>
      %cst_31 = arith.constant dense<0.000000e+00> : vector<1xf32>
      %47 = vector.multi_reduction <add>, %46, %cst_31 [1, 2] : vector<1x8x1xf32> to vector<1xf32>
      %48 = vector.shape_cast %47 : vector<1xf32> to vector<1x1x1xf32>
      %49 = vector.extract %48[0, 0, 0] : f32 from vector<1x1x1xf32>
      %cst_32 = arith.constant 1.250000e-01 : f32
      %50 = arith.mulf %49, %cst_32 : f32
      %51 = vector.broadcast %50 : f32 to vector<1x1xf32>
      %c0_33 = arith.constant 0 : index
      %c0_34 = arith.constant 0 : index
      %52 = vector.load %arg4[%c0_33, %c0_34] : memref<1x1xf32, #tpu.memory_space<vmem>>, vector<1x1xf32>
      tpu.vector_store %arg4[%c0_33, %c0_34], %51 {strides = array<i32>} : memref<1x1xf32, #tpu.memory_space<vmem>>, vector<1x1xf32>,
    } else {
    }
    return
  }
  func.func @transform_0(%arg0: i32) -> (i32, i32) {
    %c0_i32 = arith.constant 0 : i32
    %c0_i32_0 = arith.constant 0 : i32
    %c0_i32_1 = arith.constant 0 : i32
    return %c0_i32, %c0_i32_0 : i32, i32
  }
  func.func @transform_1(%arg0: i32) -> (i32, i32) {
    %c0_i32 = arith.constant 0 : i32
    %c0_i32_0 = arith.constant 0 : i32
    return %arg0, %c0_i32 : i32, i32
  }
  func.func @transform_2(%arg0: i32) -> (i32, i32) {
    %c0_i32 = arith.constant 0 : i32
    %c0_i32_0 = arith.constant 0 : i32
    %c0_i32_1 = arith.constant 0 : i32
    return %c0_i32, %c0_i32_0 : i32, i32
  }
  func.func @transform_3(%arg0: i32) -> (i32, i32) {
    %c0_i32 = arith.constant 0 : i32
    %c0_i32_0 = arith.constant 0 : i32
    %c0_i32_1 = arith.constant 0 : i32
    return %c0_i32, %c0_i32_0 : i32, i32
  }
}

</mosaic_0001>

<llo_original>
// kernel: tpu_custom_call.1
$region0: #{tpu_custom_call.1}
  #allocation0 [shape = 'u32[]', space=smem, size = 0x4, offset = 0x4, fixed_abs, tag = 'smem constant byte address 0x4 - core index']
  #allocation1 [shape = 'u32[144,128]{1,0:T(1,128)}', space=vmem, size = 0x12000, scoped, tag = 'internal scratch']
  #allocation2 [shape = 'bf16[8,128]{1,0:T(8,128)(2,1)}', space=vmem, size = 0x800, scoped, tag = 'scratch operand']
  #allocation3 [shape = 'f32[8,1]{1,0:T(8,128)}', space=vmem, size = 0x1000, scoped, tag = 'scratch operand']
  #allocation4 [shape = 'f32[8,1]{1,0:T(8,128)}', space=vmem, size = 0x1000, scoped, tag = 'scratch operand']
  #allocation5 [shape = 'f32[8,1]{1,0:T(8,128)}', space=vmem, size = 0x1000, scoped, tag = 'scratch operand']
  %s0 = inlined_call_operand.vmem [shape: f32[8,128], index: 0, kind: input, shape index: {}]
  %s1 = inlined_call_operand.hbm [shape: bf16[384,128], index: 1, kind: input, shape index: {}]
  %s2 = inlined_call_operand.vmem [shape: s32[8,1], index: 2, kind: input, shape index: {}]
  %s3 = inlined_call_operand.hbm [shape: f32[1,1], index: 3, kind: output, shape index: {}]
  %s4 = sld [smem:[#allocation0]]
  $region34: #{tpu_custom_call.1} parent=0
    _
  %s6 = ssub.s32 1, %s4
  %s7 = scalar_select 0, %s6, %s4
  $region1: #{tpu_custom_call.1} parent=0
    #allocation6 [shape = 'u8[98304]{0}', space=vmem, size = 0x18000, scoped, tag = 'input window, operand 1, single buffered']
    #allocation7 [shape = 's32[1]{0}', space=sflag, size = 0x4, scoped, tag = 'scoped memory for tpu_custom_call.1']
    #allocation8 [shape = 's32[1]{0}', space=sflag, size = 0x4, scoped, tag = 'scoped memory for tpu_custom_call.1']
    #allocation9 [shape = 'u8[512]{0}', space=vmem, size = 0x400, scoped, tag = 'output window, operand 0, single buffered']
    %8 = vsyncpa [#allocation7], 0
    %9 = vsyncpa [#allocation8], 0
    // Predicated region
    $region2: #{tpu_custom_call.1} parent=1 // pred_check
      _
    $region3: #{tpu_custom_call.1} parent=1 // pred_check_branch
      %11 = sbr.rel (0) target = $region5
    $region4: #{tpu_custom_call.1} parent=1 // pred_region
      _
    $region5: #{tpu_custom_call.1} parent=1 // pred_fallthru
      _
    // Predicated region
    $region6: #{tpu_custom_call.1} parent=1 // pred_check
      _
    $region7: #{tpu_custom_call.1} parent=1 // pred_check_branch
      %13 = sbr.rel (0) target = $region9
    $region8: #{tpu_custom_call.1} parent=1 // pred_region
      %s15 = ssub.s32 3072, 3072
      %16 = vsyncadd [#allocation7], %s15
      %s17 = sshll.u32 [#allocation6], 4
      %s18 = int_to_ptr.vmem [resolvable:$true] %s17
      %23 = dma.hbm_to_vmem [thread:$0]  %s1, 3072, %s18, [#allocation7], 64, 64, 4
    $region9: #{tpu_custom_call.1} parent=1 // pred_fallthru
      _
    // Predicated region
    $region10: #{tpu_custom_call.1} parent=1 // pred_check
      _
    $region11: #{tpu_custom_call.1} parent=1 // pred_check_branch
      %25 = sbr.rel (0) target = $region13
    $region12: #{tpu_custom_call.1} parent=1 // pred_region
      _
    $region13: #{tpu_custom_call.1} parent=1 // pred_fallthru
      _
    // Predicated region
    $region14: #{tpu_custom_call.1} parent=1 // pred_check
      _
    $region15: #{tpu_custom_call.1} parent=1 // pred_check_branch
      %27 = sbr.rel (0) target = $region17
    $region16: #{tpu_custom_call.1} parent=1 // pred_region
      %28 = dma.done [#allocation7], 3072
    $region17: #{tpu_custom_call.1} parent=1 // pred_fallthru
      _
    %p30 = scmp.eq.s32.totalorder 0, 0
    // Predicated region
    $region18: #{tpu_custom_call.1} parent=1 // pred_check
      %p31 = pneg %p30
    $region19: #{tpu_custom_call.1} parent=1 // pred_check_branch
      %33 = sbr.rel (%p31) target = $region21
    $region20: #{tpu_custom_call.1} parent=1 // pred_region
      %v34 = vld [vmem:[%s0] sm:$0xff]
      %v35 = vmul.f32 %v34, %v34
      %36 = vadd.xlane.f32.xlu0 %v35
      %v37 = vpop.xlane.xlu0 %36
      %v38 = vmax.f32 %v37, 1e-24
      %v39 = vrsqrt.pop %v38
      %v40 = vmul.f32 %v39, 20.0
      %v41 = vmul.f32 %v34, %v40
      %v42 = vpack.c.bf16 %v41, %v41
      %43 = vst [vmem:[#allocation2] sm:$0xf] %v42
      %vm44 = vcmask 7168
      %45 = vst.msk [vmem:[#allocation3] sm:$0xff] %vm44, -inf
      %46 = vst.msk [vmem:[#allocation4] sm:$0xff] %vm44, 0.0
      %47 = vst.msk [vmem:[#allocation5] sm:$0xff] %vm44, 0.0
    $region21: #{tpu_custom_call.1} parent=1 // pred_fallthru
      _
    %v48 = vld [vmem:[#allocation2] sm:$0xf]
    %v49 = vld [vmem:[%s2] sm:$0xff]
    %v50 = vld [vmem:[#allocation6] sm:$0xf]
    %v51 = vld [vmem:[#allocation6 + $0x4] sm:$0xf]
    %v52 = vld [vmem:[#allocation6 + $0x8] sm:$0xf]
    %v53 = vld [vmem:[#allocation6 + $0xc] sm:$0xf]
    %v54 = vld [vmem:[#allocation6 + $0x10] sm:$0xf]
    %v55 = vld [vmem:[#allocation6 + $0x14] sm:$0xf]
    %v56 = vld [vmem:[#allocation6 + $0x18] sm:$0xf]
    %v57 = vld [vmem:[#allocation6 + $0x1c] sm:$0xf]
    %v58 = vld [vmem:[#allocation6 + $0x20] sm:$0xf]
    %v59 = vld [vmem:[#allocation6 + $0x24] sm:$0xf]
    %v60 = vld [vmem:[#allocation6 + $0x28] sm:$0xf]
    %v61 = vld [vmem:[#allocation6 + $0x2c] sm:$0xf]
    %v62 = vld [vmem:[#allocation6 + $0x30] sm:$0xf]
    %v63 = vld [vmem:[#allocation6 + $0x34] sm:$0xf]
    %v64 = vld [vmem:[#allocation6 + $0x38] sm:$0xf]
    %v65 = vld [vmem:[#allocation6 + $0x3c] sm:$0xf]
    %v66 = vld [vmem:[#allocation6 + $0x40] sm:$0xf]
    %v67 = vld [vmem:[#allocation6 + $0x44] sm:$0xf]
    %v68 = vld [vmem:[#allocation6 + $0x48] sm:$0xf]
    %v69 = vld [vmem:[#allocation6 + $0x4c] sm:$0xf]
    %v70 = vld [vmem:[#allocation6 + $0x50] sm:$0xf]
    %v71 = vld [vmem:[#allocation6 + $0x54] sm:$0xf]
    %v72 = vld [vmem:[#allocation6 + $0x58] sm:$0xf]
    %v73 = vld [vmem:[#allocation6 + $0x5c] sm:$0xf]
    %v74 = vld [vmem:[#allocation6 + $0x60] sm:$0xf]
    %v75 = vld [vmem:[#allocation6 + $0x64] sm:$0xf]
    %v76 = vld [vmem:[#allocation6 + $0x68] sm:$0xf]
    %v77 = vld [vmem:[#allocation6 + $0x6c] sm:$0xf]
    %v78 = vld [vmem:[#allocation6 + $0x70] sm:$0xf]
    %v79 = vld [vmem:[#allocation6 + $0x74] sm:$0xf]
    %v80 = vld [vmem:[#allocation6 + $0x78] sm:$0xf]
    %v81 = vld [vmem:[#allocation6 + $0x7c] sm:$0xf]
    %v82 = vld [vmem:[#allocation6 + $0x80] sm:$0xf]
    %v83 = vld [vmem:[#allocation6 + $0x84] sm:$0xf]
    %v84 = vld [vmem:[#allocation6 + $0x88] sm:$0xf]
    %v85 = vld [vmem:[#allocation6 + $0x8c] sm:$0xf]
    %v86 = vld [vmem:[#allocation6 + $0x90] sm:$0xf]
    %v87 = vld [vmem:[#allocation6 + $0x94] sm:$0xf]
    %v88 = vld [vmem:[#allocation6 + $0x98] sm:$0xf]
    %v89 = vld [vmem:[#allocation6 + $0x9c] sm:$0xf]
    %v90 = vld [vmem:[#allocation6 + $0xa0] sm:$0xf]
    %v91 = vld [vmem:[#allocation6 + $0xa4] sm:$0xf]
    %v92 = vld [vmem:[#allocation6 + $0xa8] sm:$0xf]
    %v93 = vld [vmem:[#allocation6 + $0xac] sm:$0xf]
    %v94 = vld [vmem:[#allocation6 + $0xb0] sm:$0xf]
    %v95 = vld [vmem:[#allocation6 + $0xb4] sm:$0xf]
    %v96 = vld [vmem:[#allocation6 + $0xb8] sm:$0xf]
    %v97 = vld [vmem:[#allocation6 + $0xbc] sm:$0xf]
    %v146 = vunpack.c.l.b16 %v50
    %v147 = vunpack.c.l.b16 %v51
    %v148 = vunpack.c.l.b16 %v52
    %v149 = vunpack.c.l.b16 %v53
    %v150 = vunpack.c.l.b16 %v54
    %v151 = vunpack.c.l.b16 %v55
    %v152 = vunpack.c.l.b16 %v56
    %v153 = vunpack.c.l.b16 %v57
    %v154 = vunpack.c.l.b16 %v58
    %v155 = vunpack.c.l.b16 %v59
    %v156 = vunpack.c.l.b16 %v60
    %v157 = vunpack.c.l.b16 %v61
    %v158 = vunpack.c.l.b16 %v62
    %v159 = vunpack.c.l.b16 %v63
    %v160 = vunpack.c.l.b16 %v64
    %v161 = vunpack.c.l.b16 %v65
    %v162 = vunpack.c.l.b16 %v66
    %v163 = vunpack.c.l.b16 %v67
    %v164 = vunpack.c.l.b16 %v68
    %v165 = vunpack.c.l.b16 %v69
    %v166 = vunpack.c.l.b16 %v70
    %v167 = vunpack.c.l.b16 %v71
    %v168 = vunpack.c.l.b16 %v72
    %v169 = vunpack.c.l.b16 %v73
    %v170 = vunpack.c.l.b16 %v74
    %v171 = vunpack.c.l.b16 %v75
    %v172 = vunpack.c.l.b16 %v76
    %v173 = vunpack.c.l.b16 %v77
    %v174 = vunpack.c.l.b16 %v78
    %v175 = vunpack.c.l.b16 %v79
    %v176 = vunpack.c.l.b16 %v80
    %v177 = vunpack.c.l.b16 %v81
    %v178 = vunpack.c.l.b16 %v82
    %v179 = vunpack.c.l.b16 %v83
    %v180 = vunpack.c.l.b16 %v84
    %v181 = vunpack.c.l.b16 %v85
    %v182 = vunpack.c.l.b16 %v86
    %v183 = vunpack.c.l.b16 %v87
    %v184 = vunpack.c.l.b16 %v88
    %v185 = vunpack.c.l.b16 %v89
    %v186 = vunpack.c.l.b16 %v90
    %v187 = vunpack.c.l.b16 %v91
    %v188 = vunpack.c.l.b16 %v92
    %v189 = vunpack.c.l.b16 %v93
    %v190 = vunpack.c.l.b16 %v94
    %v191 = vunpack.c.l.b16 %v95
    %v192 = vunpack.c.l.b16 %v96
    %v193 = vunpack.c.l.b16 %v97
    %v194 = vpack.c.b16 %v147, %v146
    %v195 = vpack.c.b16 %v149, %v148
    %v196 = vpack.c.b16 %v151, %v150
    %v197 = vpack.c.b16 %v153, %v152
    %v198 = vpack.c.b16 %v155, %v154
    %v199 = vpack.c.b16 %v157, %v156
    %v200 = vpack.c.b16 %v159, %v158
    %v201 = vpack.c.b16 %v161, %v160
    %v202 = vpack.c.b16 %v163, %v162
    %v203 = vpack.c.b16 %v165, %v164
    %v204 = vpack.c.b16 %v167, %v166
    %v205 = vpack.c.b16 %v169, %v168
    %v206 = vpack.c.b16 %v171, %v170
    %v207 = vpack.c.b16 %v173, %v172
    %v208 = vpack.c.b16 %v175, %v174
    %v209 = vpack.c.b16 %v177, %v176
    %v210 = vpack.c.b16 %v179, %v178
    %v211 = vpack.c.b16 %v181, %v180
    %v212 = vpack.c.b16 %v183, %v182
    %v213 = vpack.c.b16 %v185, %v184
    %v214 = vpack.c.b16 %v187, %v186
    %v215 = vpack.c.b16 %v189, %v188
    %v216 = vpack.c.b16 %v191, %v190
    %v217 = vpack.c.b16 %v193, %v192
    %242 = vmatprep.subr.bf16.mxu0 0
    %243 = vmatpush1.bf16.xpose.msra.mxu0 %v194
    %244 = vmatprep.subr.bf16.mxu0 0
    %245 = vmatpush1.bf16.xpose.msra.mxu0 %v195
    %246 = vmatprep.subr.bf16.mxu0 0
    %247 = vmatpush1.bf16.xpose.msra.mxu0 %v196
    %248 = vmatprep.subr.bf16.mxu0 0
    %249 = vmatpush1.bf16.xpose.msra.mxu0 %v197
    %250 = vmatprep.subr.bf16.mxu0 0
    %251 = vmatpush1.bf16.xpose.msra.mxu0 %v198
    %252 = vmatprep.subr.bf16.mxu0 0
    %253 = vmatpush1.bf16.xpose.msra.mxu0 %v199
    %254 = vmatprep.subr.bf16.mxu0 0
    %255 = vmatpush1.bf16.xpose.msra.mxu0 %v200
    %256 = vmatprep.subr.bf16.mxu0 0
    %257 = vmatpush1.bf16.xpose.msra.mxu0 %v201
    %258 = vmatprep.subr.bf16.mxu0 0
    %259 = vmatpush1.bf16.xpose.msra.mxu0 %v202
    %260 = vmatprep.subr.bf16.mxu0 0
    %261 = vmatpush1.bf16.xpose.msra.mxu0 %v203
    %262 = vmatprep.subr.bf16.mxu0 0
    %263 = vmatpush1.bf16.xpose.msra.mxu0 %v204
    %264 = vmatprep.subr.bf16.mxu0 0
    %265 = vmatpush1.bf16.xpose.msra.mxu0 %v205
    %266 = vmatprep.subr.bf16.mxu0 0
    %267 = vmatpush1.bf16.xpose.msra.mxu0 %v206
    %268 = vmatprep.subr.bf16.mxu0 0
    %269 = vmatpush1.bf16.xpose.msra.mxu0 %v207
    %270 = vmatprep.subr.bf16.mxu0 0
    %271 = vmatpush1.bf16.xpose.msra.mxu0 %v208
    %272 = vmatprep.subr.bf16.mxu0 0
    %273 = vmatpush1.bf16.xpose.msra.mxu0 %v209
    %274 = vmatprep.mubr.bf16.mxu0 0
    %275 = vmatmul.mubr.bf16.gmra.mrb[0].mxu0 %v48
    %v276 = vpop.f32.mrb[0].mxu0
    %v277 = vadd.f32 0.0, %v276
    %v278 = vpop.f32.mrb[0].mxu0
    %v279 = vadd.f32 0.0, %v278
    %v280 = vpop.f32.mrb[0].mxu0
    %v281 = vpop.f32.mrb[0].mxu0
    %282 = vdwg.mxu0
    %283 = vmatprep.subr.bf16.mxu0 0
    %284 = vmatpush1.bf16.xpose.msra.mxu0 %v210
    %285 = vmatprep.subr.bf16.mxu0 0
    %286 = vmatpush1.bf16.xpose.msra.mxu0 %v211
    %287 = vmatprep.subr.bf16.mxu0 0
    %288 = vmatpush1.bf16.xpose.msra.mxu0 %v212
    %289 = vmatprep.subr.bf16.mxu0 0
    %290 = vmatpush1.bf16.xpose.msra.mxu0 %v213
    %291 = vmatprep.subr.bf16.mxu0 0
    %292 = vmatpush1.bf16.xpose.msra.mxu0 %v214
    %293 = vmatprep.subr.bf16.mxu0 0
    %294 = vmatpush1.bf16.xpose.msra.mxu0 %v215
    %295 = vmatprep.subr.bf16.mxu0 0
    %296 = vmatpush1.bf16.xpose.msra.mxu0 %v216
    %297 = vmatprep.subr.bf16.mxu0 0
    %298 = vmatpush1.bf16.xpose.msra.mxu0 %v217
    %299 = vmatprep.subr.bf16.mxu0 0
    %300 = vmatpush1.bf16.xpose.msra.mxu0 0
    %301 = vmatprep.subr.bf16.mxu0 0
    %302 = vmatpush1.bf16.xpose.msra.mxu0 0
    %303 = vmatprep.subr.bf16.mxu0 0
    %304 = vmatpush1.bf16.xpose.msra.mxu0 0
    %305 = vmatprep.subr.bf16.mxu0 0
    %306 = vmatpush1.bf16.xpose.msra.mxu0 0
    %307 = vmatprep.subr.bf16.mxu0 0
    %308 = vmatpush1.bf16.xpose.msra.mxu0 0
    %309 = vmatprep.subr.bf16.mxu0 0
    %310 = vmatpush1.bf16.xpose.msra.mxu0 0
    %311 = vmatprep.subr.bf16.mxu0 0
    %312 = vmatpush1.bf16.xpose.msra.mxu0 0
    %313 = vmatprep.subr.bf16.mxu0 0
    %314 = vmatpush1.bf16.xpose.msra.mxu0 0
    %315 = vmatprep.mubr.bf16.mxu0 0
    %316 = vmatmul.mubr.bf16.gmra.mrb[0].mxu0 %v48
    %v317 = vpop.f32.mrb[0].mxu0
    %v318 = vadd.f32 0.0, %v317
    %v319 = vpop.f32.mrb[0].mxu0
    %v320 = vpop.f32.mrb[0].mxu0
    %v321 = vpop.f32.mrb[0].mxu0
    %322 = vdwg.mxu0
    %v323 = vlaneseq
    %v324 = vand.u32 %v323, 127
    %v325 = vadd.s32 %v324, 128
    %v326 = vadd.s32 %v324, 256
    %s327 = smul.u32 0, 384
    %v328 = vstv %s327
    %v329 = vadd.s32 %v324, %v328
    %v330 = vadd.s32 %v325, %v328
    %v331 = vadd.s32 %v326, %v328
    %v332 = vld [vmem:[#allocation3] sm:$0xff]
    %v333 = vmax.f32 %v277, %v279
    %v334 = vmax.f32 %v333, %v318
    %335 = vmax.xlane.f32.xlu0 %v334
    %v336 = vpop.xlane.xlu0 %335
    %v337 = vmax.f32 %v332, %v336
    %v338 = vsub.f32 %v332, %v337
    %v339 = vmul.f32 %v338, 1.442695
    %v340 = vpow.pop %v339
    %v341 = vld [vmem:[#allocation4] sm:$0xff]
    %v342 = vmul.f32 %v340, %v341
    %344 = vset.pattern.permute.xlu0 0
    %345 = vperm.xlu0 %344, %v337
    %v346 = vpop.permute.xlu0 %345
    %v348 = vsub.f32 %v277, %v346
    %v349 = vsub.f32 %v279, %v346
    %v350 = vsub.f32 %v318, %v346
    %v351 = vmul.f32 %v348, 1.442695
    %v352 = vpow.pop %v351
    %v353 = vmul.f32 %v349, 1.442695
    %v354 = vpow.pop %v353
    %v355 = vmul.f32 %v350, 1.442695
    %v356 = vpow.pop %v355
    %v357 = vadd.f32 %v352, %v354
    %v358 = vadd.f32 %v357, %v356
    %359 = vadd.xlane.f32.xlu0 %v358
    %v360 = vpop.xlane.xlu0 %359
    %v361 = vadd.f32 %v342, %v360
    %vm362 = vcmask 7168
    %363 = vst.msk [vmem:[#allocation4] sm:$0xff] %vm362, %v361
    %364 = vst.msk [vmem:[#allocation3] sm:$0xff] %vm362, %v337
    %v365 = vld [vmem:[#allocation5] sm:$0xff]
    %366 = vset.pattern.permute.xlu0 0
    %367 = vperm.xlu0 %366, %v49
    %v368 = vpop.permute.xlu0 %367
    %vm369 = vcmp.eq.s32.totalorder %v329, %v368
    %vm370 = vcmp.eq.s32.totalorder %v330, %v368
    %vm371 = vcmp.eq.s32.totalorder %v331, %v368
    %v372 = vsel %vm369, %v277, 0.0
    %v373 = vsel %vm370, %v279, 0.0
    %v374 = vsel %vm371, %v318, 0.0
    %v375 = vadd.f32 %v372, %v373
    %v376 = vadd.f32 %v375, %v374
    %377 = vadd.xlane.f32.xlu0 %v376
    %v378 = vpop.xlane.xlu0 %377
    %v379 = vadd.f32 %v365, %v378
    %380 = vst.msk [vmem:[#allocation5] sm:$0xff] %vm362, %v379
    // Predicated region
    $region22: #{tpu_custom_call.1} parent=1 // pred_check
      %p381 = pneg %p30
    $region23: #{tpu_custom_call.1} parent=1 // pred_check_branch
      %383 = sbr.rel (%p381) target = $region25
    $region24: #{tpu_custom_call.1} parent=1 // pred_region
      %v384 = vld [vmem:[#allocation3] sm:$0xff]
      %v385 = vld [vmem:[#allocation4] sm:$0xff]
      %v386 = vlog2.pop %v385
      %v387 = vmul.f32 %v386, 0.6931472
      %v388 = vadd.f32 %v384, %v387
      %v389 = vld [vmem:[#allocation5] sm:$0xff]
      %v390 = vsub.f32 %v388, %v389
      %v391 = vsel %vm362, %v390, 0.0
      %392 = vadd.xlane.f32.xlu0 %v391
      %v393 = vpop.xlane.xlu0 %392
      %v394 = vrot.slane %v393, 4
      %v395 = vadd.f32 %v393, %v394
      %v396 = vrot.slane %v395, 2
      %v397 = vadd.f32 %v395, %v396
      %v398 = vrot.slane %v397, 1
      %v399 = vadd.f32 %v397, %v398
      %s400 = vtos %v399
      %s401 = smul.f32 %s400, 0.125
      %v402 = vstv %s401
      %vm403 = vcmask 0
      %404 = vst.msk [vmem:[#allocation9] sm:$0x1] %vm403, %v402
    $region25: #{tpu_custom_call.1} parent=1 // pred_fallthru
      _
    // Predicated region
    $region26: #{tpu_custom_call.1} parent=1 // pred_check
      _
    $region27: #{tpu_custom_call.1} parent=1 // pred_check_branch
      %406 = sbr.rel (0) target = $region29
    $region28: #{tpu_custom_call.1} parent=1 // pred_region
      %s408 = ssub.s32 16, 16
      %409 = vsyncadd [#allocation8], %s408
      %s411 = sshll.u32 [#allocation9], 4
      %s412 = int_to_ptr.vmem [resolvable:$true] %s411
      %414 = dma.vmem_to_hbm [thread:$0]  %s412, 16, %s3, [#allocation8]
    $region29: #{tpu_custom_call.1} parent=1 // pred_fallthru
      _
    // Predicated region
    $region30: #{tpu_custom_call.1} parent=1 // pred_check
      _
    $region31: #{tpu_custom_call.1} parent=1 // pred_check_branch
      %416 = sbr.rel (0) target = $region33
    $region32: #{tpu_custom_call.1} parent=1 // pred_region
      %417 = dma.done [#allocation8], 16
    $region33: #{tpu_custom_call.1} parent=1 // pred_fallthru
      _
    %418 = vsyncpa [#allocation7], 1
    %419 = vsyncpa [#allocation8], 1

</llo_original>
